<compile_context>
chip_gen: v7x
topology: tpu7x:2x2x1
jax: 0.10.0
libtpu: 0.0.40
codegen_flags: <defaults>
</compile_context>

<pallas_src>
import jax
import jax.numpy as jnp
from jax.experimental import pallas as pl
from jax.experimental.pallas import tpu as pltpu

EPS = 1e-6
TR_MAX = 4096          # rows of 128 lanes per grid step = 131072 boxes / step
BOXES_PER_ROW = 32     # 32 boxes * 4 coords = 128 lanes


def _shl(v, s):
    # result[:, l] = v[:, (l + s) % 128]  (static lane shift; wrapped lanes are
    # never consumed by any lane we read results from).
    return jnp.concatenate([v[:, s:], v[:, :s]], axis=1)


def _iou_loss_kernel(p_ref, t_ref, o_ref):
    # p_ref, t_ref: (TR, 128) tiles of the flat <x1,y1,x2,y2>-interleaved box
    # stream; o_ref: (TR, 32) per-box losses (box-major).
    p = p_ref[...]
    t = t_ref[...]

    # lt = max(pred, target) is valid at lanes 4k (x1) / 4k+1 (y1);
    # rb = min(pred, target) is valid at lanes 4k+2 (x2) / 4k+3 (y2).
    mx = jnp.maximum(p, t)
    mn = jnp.minimum(p, t)

    # wh = clamp(rb - lt, min=0): lane 4k -> wh_x, lane 4k+1 -> wh_y.
    wh = jnp.maximum(_shl(mn, 2) - mx, 0.0)
    overlap = wh * _shl(wh, 1)                 # valid at lanes 4k

    dp = _shl(p, 2) - p                        # pred (x2-x1) at 4k, (y2-y1) at 4k+1
    area_p = dp * _shl(dp, 1)                  # valid at lanes 4k
    dt = _shl(t, 2) - t
    area_t = dt * _shl(dt, 1)

    union = jnp.maximum(area_p + area_t - overlap, EPS)
    ious = jnp.maximum(overlap / union, EPS)   # clamp(min=eps) before log
    loss = -jnp.log(ious)                      # valid at lanes 4k

    # Compact stride-4 valid lanes (4k -> k) into a dense (TR, 32) tile.
    # Five shift+select passes; bit-exact, pure VPU/XLU (no MXU, no reshapes).
    lane = jax.lax.broadcasted_iota(jnp.int32, loss.shape, 1)
    x = loss
    x = jnp.where((lane & 7) == 1,    _shl(x, 3),  x)   # lanes %8  == 1
    x = jnp.where((lane & 14) == 2,   _shl(x, 6),  x)   # lanes %16 in {2,3}
    x = jnp.where((lane & 28) == 4,   _shl(x, 12), x)   # lanes %32 in {4..7}
    x = jnp.where((lane & 56) == 8,   _shl(x, 24), x)   # lanes %64 in {8..15}
    x = jnp.where((lane & 112) == 16, _shl(x, 48), x)   # lanes     in {16..31}
    o_ref[...] = x[:, :BOXES_PER_ROW]


def iou_loss_pallas(pred, target):
    """pred, target: (N, 4) float boxes -> loss (N,) float32."""
    assert pred.shape == target.shape and pred.shape[-1] == 4
    n = pred.shape[0]
    if n == 0:
        return jnp.zeros((0,), jnp.float32)

    # Free contiguous views: (N, 4) -> flat coordinate stream.
    p_flat = pred.astype(jnp.float32).reshape(-1)
    t_flat = target.astype(jnp.float32).reshape(-1)

    # Only pad (flat, zero) when N is not a multiple of 32 boxes.
    n_pad = pl.cdiv(n, BOXES_PER_ROW) * BOXES_PER_ROW
    if n_pad != n:
        pad = (n_pad - n) * 4
        p_flat = jnp.pad(p_flat, (0, pad))
        t_flat = jnp.pad(t_flat, (0, pad))

    rows = n_pad // BOXES_PER_ROW          # each row = 128 lanes = 32 boxes
    p2 = p_flat.reshape(rows, 128)
    t2 = t_flat.reshape(rows, 128)

    # Row tile: big tiles for large N; >= ~4 grid steps for mid-size N so both
    # v7x TensorCores get work; single full block only for tiny inputs.
    if rows <= 8:
        tr = rows
    else:
        tr = min(TR_MAX, ((pl.cdiv(rows, 4) + 7) // 8) * 8)
    grid = (pl.cdiv(rows, tr),)

    out = pl.pallas_call(
        _iou_loss_kernel,
        out_shape=jax.ShapeDtypeStruct((rows, BOXES_PER_ROW), jnp.float32),
        grid=grid,
        in_specs=[
            pl.BlockSpec((tr, 128), lambda i: (i, 0)),
            pl.BlockSpec((tr, 128), lambda i: (i, 0)),
        ],
        out_specs=pl.BlockSpec((tr, BOXES_PER_ROW), lambda i: (i, 0)),
        compiler_params=pltpu.CompilerParams(
            dimension_semantics=("parallel",)),
    )(p2, t2)

    loss = out.reshape(-1)                 # (rows*32,) == (n_pad,), box order
    return loss if n_pad == n else loss[:n]


def _iou_loss_ref(pred, target, eps=EPS):
    # Pure-JAX reference mirroring the PyTorch code (aligned, mode='iou').
    lt = jnp.maximum(pred[:, :2], target[:, :2])
    rb = jnp.minimum(pred[:, 2:], target[:, 2:])
    wh = jnp.maximum(rb - lt, 0.0)
    overlap = wh[:, 0] * wh[:, 1]
    area1 = (pred[:, 2] - pred[:, 0]) * (pred[:, 3] - pred[:, 1])
    area2 = (target[:, 2] - target[:, 0]) * (target[:, 3] - target[:, 1])
    union = jnp.maximum(area1 + area2 - overlap, eps)
    ious = jnp.maximum(overlap / union, eps)
    return -jnp.log(ious)


def _make_boxes(key, n):
    k1, k2, k3, k4 = jax.random.split(key, 4)
    p_xy = jax.random.uniform(k1, (n, 2), jnp.float32, 0.0, 20.0)
    p_wh = jax.random.uniform(k2, (n, 2), jnp.float32, 1.0, 10.0)
    pred = jnp.concatenate([p_xy, p_xy + p_wh], axis=1)
    t_xy = p_xy + jax.random.uniform(k3, (n, 2), jnp.float32, -2.0, 2.0)
    t_wh = jax.random.uniform(k4, (n, 2), jnp.float32, 1.0, 10.0)
    target = jnp.concatenate([t_xy, t_xy + t_wh], axis=1)
    return pred, target


if __name__ == "__main__":
    key = jax.random.PRNGKey(0)
    k1, k2, k3 = jax.random.split(key, 3)

    # n=8: single tiny block + pad path; n=300: two-step ragged grid + pad path;
    # n=4096: aligned (zero wrapper copies), 4 parallel grid steps.
    for n, k in ((8, k1), (300, k2), (4096, k3)):
        pred, target = _make_boxes(k, n)
        loss = iou_loss_pallas(pred, target)
        jax.block_until_ready(loss)
        ref = _iou_loss_ref(pred, target)
        assert loss.shape == (n,), (loss.shape, n)
        assert jnp.allclose(loss, ref, rtol=1e-4, atol=1e-6), (
            f"mismatch at n={n}: max abs err "
            f"{float(jnp.max(jnp.abs(loss - ref)))}")

    print("KERNEL_OK")
</pallas_src>

<mosaic_0001>
module attributes {stable_mosaic.version = 11 : i64} {
  func.func @_iou_loss_kernel(%arg0: i32, %arg1: memref<1x128xf32, #tpu.memory_space<vmem>>, %arg2: memref<1x128xf32, #tpu.memory_space<vmem>>, %arg3: memref<1x32xf32, #tpu.memory_space<vmem>>) attributes {dimension_semantics = [#tpu.dimension_semantics<parallel>], iteration_bounds = array<i64: 1>, scalar_prefetch = 0 : i64, scratch_operands = 0 : i64, tpu.core_type = #tpu.core_type<tc>, window_params = [{transform_indices = @transform_0, window_bounds = array<i64: 1, 128>}, {transform_indices = @transform_1, window_bounds = array<i64: 1, 128>}, {transform_indices = @transform_2, window_bounds = array<i64: 1, 32>}]} {
    %c0 = arith.constant 0 : index
    %c0_0 = arith.constant 0 : index
    %0 = vector.load %arg1[%c0, %c0_0] : memref<1x128xf32, #tpu.memory_space<vmem>>, vector<1x128xf32>
    %c0_1 = arith.constant 0 : index
    %c0_2 = arith.constant 0 : index
    %1 = vector.load %arg2[%c0_1, %c0_2] : memref<1x128xf32, #tpu.memory_space<vmem>>, vector<1x128xf32>
    %2 = arith.maximumf %0, %1 : vector<1x128xf32>
    %3 = arith.minimumf %0, %1 : vector<1x128xf32>
    %4 = vector.extract_strided_slice %3 {offsets = [0, 2], sizes = [1, 126], strides = [1, 1]} : vector<1x128xf32> to vector<1x126xf32>
    %5 = vector.extract_strided_slice %3 {offsets = [0, 0], sizes = [1, 2], strides = [1, 1]} : vector<1x128xf32> to vector<1x2xf32>
    %6 = tpu.concatenate %4, %5 in 1 : vector<1x126xf32>, vector<1x2xf32> -> vector<1x128xf32>
    %7 = arith.subf %6, %2 : vector<1x128xf32>
    %cst = arith.constant 0.000000e+00 : f32
    %8 = vector.broadcast %cst : f32 to vector<1x128xf32>
    %9 = arith.maximumf %7, %8 : vector<1x128xf32>
    %10 = vector.extract_strided_slice %9 {offsets = [0, 1], sizes = [1, 127], strides = [1, 1]} : vector<1x128xf32> to vector<1x127xf32>
    %11 = vector.extract_strided_slice %9 {offsets = [0, 0], sizes = [1, 1], strides = [1, 1]} : vector<1x128xf32> to vector<1x1xf32>
    %12 = tpu.concatenate %10, %11 in 1 : vector<1x127xf32>, vector<1x1xf32> -> vector<1x128xf32>
    %13 = arith.mulf %9, %12 : vector<1x128xf32>
    %14 = vector.extract_strided_slice %0 {offsets = [0, 2], sizes = [1, 126], strides = [1, 1]} : vector<1x128xf32> to vector<1x126xf32>
    %15 = vector.extract_strided_slice %0 {offsets = [0, 0], sizes = [1, 2], strides = [1, 1]} : vector<1x128xf32> to vector<1x2xf32>
    %16 = tpu.concatenate %14, %15 in 1 : vector<1x126xf32>, vector<1x2xf32> -> vector<1x128xf32>
    %17 = arith.subf %16, %0 : vector<1x128xf32>
    %18 = vector.extract_strided_slice %17 {offsets = [0, 1], sizes = [1, 127], strides = [1, 1]} : vector<1x128xf32> to vector<1x127xf32>
    %19 = vector.extract_strided_slice %17 {offsets = [0, 0], sizes = [1, 1], strides = [1, 1]} : vector<1x128xf32> to vector<1x1xf32>
    %20 = tpu.concatenate %18, %19 in 1 : vector<1x127xf32>, vector<1x1xf32> -> vector<1x128xf32>
    %21 = arith.mulf %17, %20 : vector<1x128xf32>
    %22 = vector.extract_strided_slice %1 {offsets = [0, 2], sizes = [1, 126], strides = [1, 1]} : vector<1x128xf32> to vector<1x126xf32>
    %23 = vector.extract_strided_slice %1 {offsets = [0, 0], sizes = [1, 2], strides = [1, 1]} : vector<1x128xf32> to vector<1x2xf32>
    %24 = tpu.concatenate %22, %23 in 1 : vector<1x126xf32>, vector<1x2xf32> -> vector<1x128xf32>
    %25 = arith.subf %24, %1 : vector<1x128xf32>
    %26 = vector.extract_strided_slice %25 {offsets = [0, 1], sizes = [1, 127], strides = [1, 1]} : vector<1x128xf32> to vector<1x127xf32>
    %27 = vector.extract_strided_slice %25 {offsets = [0, 0], sizes = [1, 1], strides = [1, 1]} : vector<1x128xf32> to vector<1x1xf32>
    %28 = tpu.concatenate %26, %27 in 1 : vector<1x127xf32>, vector<1x1xf32> -> vector<1x128xf32>
    %29 = arith.mulf %25, %28 : vector<1x128xf32>
    %30 = arith.addf %21, %29 : vector<1x128xf32>
    %31 = arith.subf %30, %13 : vector<1x128xf32>
    %cst_3 = arith.constant 9.99999997E-7 : f32
    %32 = vector.broadcast %cst_3 : f32 to vector<1x128xf32>
    %33 = arith.maximumf %31, %32 : vector<1x128xf32>
    %34 = arith.divf %13, %33 : vector<1x128xf32>
    %cst_4 = arith.constant 9.99999997E-7 : f32
    %35 = vector.broadcast %cst_4 : f32 to vector<1x128xf32>
    %36 = arith.maximumf %34, %35 : vector<1x128xf32>
    %37 = math.log %36 : vector<1x128xf32>
    %cst_5 = arith.constant 0.000000e+00 : f32
    %38 = vector.broadcast %cst_5 : f32 to vector<1x128xf32>
    %39 = arith.subf %38, %37 : vector<1x128xf32>
    %40 = tpu.iota {dimensions = array<i32: 1>} : vector<1x128xi32>
    %c7_i32 = arith.constant 7 : i32
    %41 = vector.broadcast %c7_i32 : i32 to vector<1x128xi32>
    %42 = arith.andi %40, %41 : vector<1x128xi32>
    %c1_i32 = arith.constant 1 : i32
    %43 = vector.broadcast %c1_i32 : i32 to vector<1x128xi32>
    %44 = arith.cmpi eq, %42, %43 : vector<1x128xi32>
    %45 = vector.extract_strided_slice %39 {offsets = [0, 3], sizes = [1, 125], strides = [1, 1]} : vector<1x128xf32> to vector<1x125xf32>
    %46 = vector.extract_strided_slice %39 {offsets = [0, 0], sizes = [1, 3], strides = [1, 1]} : vector<1x128xf32> to vector<1x3xf32>
    %47 = tpu.concatenate %45, %46 in 1 : vector<1x125xf32>, vector<1x3xf32> -> vector<1x128xf32>
    %48 = arith.select %44, %47, %39 : vector<1x128xi1>, vector<1x128xf32>
    %c14_i32 = arith.constant 14 : i32
    %49 = vector.broadcast %c14_i32 : i32 to vector<1x128xi32>
    %50 = arith.andi %40, %49 : vector<1x128xi32>
    %c2_i32 = arith.constant 2 : i32
    %51 = vector.broadcast %c2_i32 : i32 to vector<1x128xi32>
    %52 = arith.cmpi eq, %50, %51 : vector<1x128xi32>
    %53 = vector.extract_strided_slice %48 {offsets = [0, 6], sizes = [1, 122], strides = [1, 1]} : vector<1x128xf32> to vector<1x122xf32>
    %54 = vector.extract_strided_slice %48 {offsets = [0, 0], sizes = [1, 6], strides = [1, 1]} : vector<1x128xf32> to vector<1x6xf32>
    %55 = tpu.concatenate %53, %54 in 1 : vector<1x122xf32>, vector<1x6xf32> -> vector<1x128xf32>
    %56 = arith.select %52, %55, %48 : vector<1x128xi1>, vector<1x128xf32>
    %c28_i32 = arith.constant 28 : i32
    %57 = vector.broadcast %c28_i32 : i32 to vector<1x128xi32>
    %58 = arith.andi %40, %57 : vector<1x128xi32>
    %c4_i32 = arith.constant 4 : i32
    %59 = vector.broadcast %c4_i32 : i32 to vector<1x128xi32>
    %60 = arith.cmpi eq, %58, %59 : vector<1x128xi32>
    %61 = vector.extract_strided_slice %56 {offsets = [0, 12], sizes = [1, 116], strides = [1, 1]} : vector<1x128xf32> to vector<1x116xf32>
    %62 = vector.extract_strided_slice %56 {offsets = [0, 0], sizes = [1, 12], strides = [1, 1]} : vector<1x128xf32> to vector<1x12xf32>
    %63 = tpu.concatenate %61, %62 in 1 : vector<1x116xf32>, vector<1x12xf32> -> vector<1x128xf32>
    %64 = arith.select %60, %63, %56 : vector<1x128xi1>, vector<1x128xf32>
    %c56_i32 = arith.constant 56 : i32
    %65 = vector.broadcast %c56_i32 : i32 to vector<1x128xi32>
    %66 = arith.andi %40, %65 : vector<1x128xi32>
    %c8_i32 = arith.constant 8 : i32
    %67 = vector.broadcast %c8_i32 : i32 to vector<1x128xi32>
    %68 = arith.cmpi eq, %66, %67 : vector<1x128xi32>
    %69 = vector.extract_strided_slice %64 {offsets = [0, 24], sizes = [1, 104], strides = [1, 1]} : vector<1x128xf32> to vector<1x104xf32>
    %70 = vector.extract_strided_slice %64 {offsets = [0, 0], sizes = [1, 24], strides = [1, 1]} : vector<1x128xf32> to vector<1x24xf32>
    %71 = tpu.concatenate %69, %70 in 1 : vector<1x104xf32>, vector<1x24xf32> -> vector<1x128xf32>
    %72 = arith.select %68, %71, %64 : vector<1x128xi1>, vector<1x128xf32>
    %c112_i32 = arith.constant 112 : i32
    %73 = vector.broadcast %c112_i32 : i32 to vector<1x128xi32>
    %74 = arith.andi %40, %73 : vector<1x128xi32>
    %c16_i32 = arith.constant 16 : i32
    %75 = vector.broadcast %c16_i32 : i32 to vector<1x128xi32>
    %76 = arith.cmpi eq, %74, %75 : vector<1x128xi32>
    %77 = vector.extract_strided_slice %72 {offsets = [0, 48], sizes = [1, 80], strides = [1, 1]} : vector<1x128xf32> to vector<1x80xf32>
    %78 = vector.extract_strided_slice %72 {offsets = [0, 0], sizes = [1, 48], strides = [1, 1]} : vector<1x128xf32> to vector<1x48xf32>
    %79 = tpu.concatenate %77, %78 in 1 : vector<1x80xf32>, vector<1x48xf32> -> vector<1x128xf32>
    %80 = arith.select %76, %79, %72 : vector<1x128xi1>, vector<1x128xf32>
    %81 = vector.extract_strided_slice %80 {offsets = [0, 0], sizes = [1, 32], strides = [1, 1]} : vector<1x128xf32> to vector<1x32xf32>
    %c0_6 = arith.constant 0 : index
    %c0_7 = arith.constant 0 : index
    %82 = vector.load %arg3[%c0_6, %c0_7] : memref<1x32xf32, #tpu.memory_space<vmem>>, vector<1x32xf32>
    tpu.vector_store %arg3[%c0_6, %c0_7], %81 {strides = array<i32>} : memref<1x32xf32, #tpu.memory_space<vmem>>, vector<1x32xf32>,
    return
  }
  func.func @transform_0(%arg0: i32) -> (i32, i32) {
    %c0_i32 = arith.constant 0 : i32
    %c0_i32_0 = arith.constant 0 : i32
    return %arg0, %c0_i32 : i32, i32
  }
  func.func @transform_1(%arg0: i32) -> (i32, i32) {
    %c0_i32 = arith.constant 0 : i32
    %c0_i32_0 = arith.constant 0 : i32
    return %arg0, %c0_i32 : i32, i32
  }
  func.func @transform_2(%arg0: i32) -> (i32, i32) {
    %c0_i32 = arith.constant 0 : i32
    %c0_i32_0 = arith.constant 0 : i32
    return %arg0, %c0_i32 : i32, i32
  }
}

</mosaic_0001>

<llo_original>
// kernel: tpu_custom_call.1
$region0: #{tpu_custom_call.1}
  #allocation0 [shape = 'u32[]', space=smem, size = 0x4, offset = 0x4, fixed_abs, tag = 'smem constant byte address 0x4 - core index']
  #allocation1 [shape = 'u32[144,128]{1,0:T(1,128)}', space=vmem, size = 0x12000, scoped, tag = 'internal scratch']
  %s0 = inlined_call_operand.hbm [shape: f32[1,128], index: 0, kind: input, shape index: {}]
  %s1 = inlined_call_operand.vmem [shape: f32[1,128], index: 1, kind: input, shape index: {}]
  %s2 = inlined_call_operand.hbm [shape: f32[1,32], index: 2, kind: output, shape index: {}]
  %s3 = sld [smem:[#allocation0]]
  $region22: #{tpu_custom_call.1} parent=0
    _
  %s5 = ssub.s32 1, %s3
  %s6 = scalar_select 0, %s5, %s3
  $region1: #{tpu_custom_call.1} parent=0
    #allocation2 [shape = 'u8[512]{0}', space=vmem, size = 0x400, scoped, tag = 'input window, operand 0, single buffered']
    #allocation3 [shape = 's32[1]{0}', space=sflag, size = 0x4, scoped, tag = 'scoped memory for tpu_custom_call.1']
    #allocation4 [shape = 's32[1]{0}', space=sflag, size = 0x4, scoped, tag = 'scoped memory for tpu_custom_call.1']
    #allocation5 [shape = 'u8[512]{0}', space=vmem, size = 0x400, scoped, tag = 'output window, operand 0, single buffered']
    %7 = vsyncpa [#allocation3], 0
    %8 = vsyncpa [#allocation4], 0
    // Predicated region
    $region2: #{tpu_custom_call.1} parent=1 // pred_check
      _
    $region3: #{tpu_custom_call.1} parent=1 // pred_check_branch
      %10 = sbr.rel (0) target = $region5
    $region4: #{tpu_custom_call.1} parent=1 // pred_region
      %s12 = ssub.s32 16, 16
      %13 = vsyncadd [#allocation3], %s12
      %s15 = sshll.u32 [#allocation2], 4
      %s16 = int_to_ptr.vmem [resolvable:$true] %s15
      %18 = dma.hbm_to_vmem [thread:$0]  %s0, 16, %s16, [#allocation3]
    $region5: #{tpu_custom_call.1} parent=1 // pred_fallthru
      _
    // Predicated region
    $region6: #{tpu_custom_call.1} parent=1 // pred_check
      _
    $region7: #{tpu_custom_call.1} parent=1 // pred_check_branch
      %20 = sbr.rel (0) target = $region9
    $region8: #{tpu_custom_call.1} parent=1 // pred_region
      _
    $region9: #{tpu_custom_call.1} parent=1 // pred_fallthru
      _
    // Predicated region
    $region10: #{tpu_custom_call.1} parent=1 // pred_check
      _
    $region11: #{tpu_custom_call.1} parent=1 // pred_check_branch
      %22 = sbr.rel (0) target = $region13
    $region12: #{tpu_custom_call.1} parent=1 // pred_region
      %23 = dma.done [#allocation3], 16
    $region13: #{tpu_custom_call.1} parent=1 // pred_fallthru
      _
    %v24 = vld [vmem:[#allocation2] sm:$0x1]
    %v25 = vld [vmem:[%s1] sm:$0x1]
    %v26 = vmax.f32 %v24, %v25
    %v27 = vmin.f32 %v24, %v25
    %v29 = vlaneseq
    %v30 = vshrl.u32 %v29, 7
    %v31 = vsub.s32 0, %v30
    %v32 = vrot.slane %v27, %v31
    %33 = vrot.lane.b32.xlu0 %v32, 126
    %v34 = vpop.permute.xlu0 %33
    %v36 = vsub.f32 %v34, %v26
    %v37 = vmax.f32 %v36, 0.0
    %39 = vrot.lane.b32.xlu0 %v37, 127
    %v40 = vpop.permute.xlu0 %39
    %v42 = vmul.f32 %v37, %v40
    %v44 = vlaneseq
    %v45 = vshrl.u32 %v44, 7
    %v46 = vsub.s32 0, %v45
    %v47 = vrot.slane %v24, %v46
    %48 = vrot.lane.b32.xlu0 %v47, 126
    %v49 = vpop.permute.xlu0 %48
    %v51 = vsub.f32 %v49, %v24
    %53 = vrot.lane.b32.xlu0 %v51, 127
    %v54 = vpop.permute.xlu0 %53
    %v56 = vmul.f32 %v51, %v54
    %v58 = vlaneseq
    %v59 = vshrl.u32 %v58, 7
    %v60 = vsub.s32 0, %v59
    %v61 = vrot.slane %v25, %v60
    %62 = vrot.lane.b32.xlu0 %v61, 126
    %v63 = vpop.permute.xlu0 %62
    %v65 = vsub.f32 %v63, %v25
    %67 = vrot.lane.b32.xlu0 %v65, 127
    %v68 = vpop.permute.xlu0 %67
    %v70 = vmul.f32 %v65, %v68
    %v71 = vadd.f32 %v56, %v70
    %v72 = vsub.f32 %v71, %v42
    %v73 = vmax.f32 %v72, 1e-06
    %v74 = vrcp.pop %v73
    %v75 = vmul.f32 %v42, %v74
    %v76 = vmax.f32 %v75, 1e-06
    %v77 = vlog2.pop %v76
    %v78 = vmul.f32 %v77, 0.6931472
    %v79 = vsub.f32 0.0, %v78
    %v80 = vlaneseq
    %v81 = vand.u32 %v80, 127
    %v82 = vand.u32 %v81, 7
    %vm83 = vcmp.eq.s32.totalorder %v82, 1
    %85 = vrot.lane.b32.xlu0 %v79, 125
    %v86 = vpop.permute.xlu0 %85
    %v88 = vsel %vm83, %v86, %v79
    %v89 = vand.u32 %v81, 14
    %vm90 = vcmp.eq.s32.totalorder %v89, 2
    %92 = vrot.lane.b32.xlu0 %v88, 122
    %v93 = vpop.permute.xlu0 %92
    %v95 = vsel %vm90, %v93, %v88
    %v96 = vand.u32 %v81, 28
    %vm97 = vcmp.eq.s32.totalorder %v96, 4
    %99 = vrot.lane.b32.xlu0 %v95, 116
    %v100 = vpop.permute.xlu0 %99
    %v102 = vsel %vm97, %v100, %v95
    %v103 = vand.u32 %v81, 56
    %vm104 = vcmp.eq.s32.totalorder %v103, 8
    %106 = vrot.lane.b32.xlu0 %v102, 104
    %v107 = vpop.permute.xlu0 %106
    %v109 = vsel %vm104, %v107, %v102
    %v110 = vand.u32 %v81, 112
    %vm111 = vcmp.eq.s32.totalorder %v110, 16
    %113 = vrot.lane.b32.xlu0 %v109, 80
    %v114 = vpop.permute.xlu0 %113
    %v116 = vsel %vm111, %v114, %v109
    %vm117 = vcmask 253952
    %118 = vst.msk [vmem:[#allocation5] sm:$0x1] %vm117, %v116
    // Predicated region
    $region14: #{tpu_custom_call.1} parent=1 // pred_check
      _
    $region15: #{tpu_custom_call.1} parent=1 // pred_check_branch
      %120 = sbr.rel (0) target = $region17
    $region16: #{tpu_custom_call.1} parent=1 // pred_region
      %s122 = ssub.s32 16, 16
      %123 = vsyncadd [#allocation4], %s122
      %s125 = sshll.u32 [#allocation5], 4
      %s126 = int_to_ptr.vmem [resolvable:$true] %s125
      %128 = dma.vmem_to_hbm [thread:$0]  %s126, 16, %s2, [#allocation4]
    $region17: #{tpu_custom_call.1} parent=1 // pred_fallthru
      _
    // Predicated region
    $region18: #{tpu_custom_call.1} parent=1 // pred_check
      _
    $region19: #{tpu_custom_call.1} parent=1 // pred_check_branch
      %130 = sbr.rel (0) target = $region21
    $region20: #{tpu_custom_call.1} parent=1 // pred_region
      %131 = dma.done [#allocation4], 16
    $region21: #{tpu_custom_call.1} parent=1 // pred_fallthru
      _
    %132 = vsyncpa [#allocation3], 1
    %133 = vsyncpa [#allocation4], 1

</llo_original>
